<compile_context>
chip_gen: v7x
topology: tpu7x:2x2x1
jax: 0.10.0
libtpu: 0.0.40
codegen_flags: <defaults>
</compile_context>

<pallas_src>
import functools
import math

import jax
import jax.numpy as jnp
from jax.experimental import pallas as pl
from jax.experimental.pallas import tpu as pltpu


_LANE = 128
_SUBLANE = 8
# VMEM budget for the double-buffered working set (2*x + 2*out + 2*pe tiles).
# Conservative so the same tiling fits v7x (64 MiB physical VMEM) as well as v5e/v6e.
_TILE_VMEM_BUDGET = 16 * 1024 * 1024
_VMEM_LIMIT_BYTES = 32 * 1024 * 1024


def _make_pe_dm(max_len: int, d_model: int, reverse: bool = False,
                dtype=jnp.float32) -> jnp.ndarray:
    """Sinusoidal table matching PyTorch extend_pe, stored as (d_model, max_len).

    Transposed ONCE here so the per-call hot path never pays a layout change.
    """
    assert d_model % 2 == 0, "d_model must be even (same constraint as the PyTorch original)"
    if reverse:
        position = jnp.arange(max_len - 1, -1, -1.0, dtype=jnp.float32)[:, None]
    else:
        position = jnp.arange(0, max_len, dtype=jnp.float32)[:, None]
    div_term = jnp.exp(
        jnp.arange(0, d_model, 2, dtype=jnp.float32)
        * -(math.log(10000.0) / d_model))
    angles = position * div_term                       # (max_len, d_model//2)
    pe = jnp.zeros((max_len, d_model), dtype=jnp.float32)
    pe = pe.at[:, 0::2].set(jnp.sin(angles))
    pe = pe.at[:, 1::2].set(jnp.cos(angles))
    return jnp.transpose(pe, (1, 0)).astype(dtype)     # (d_model, max_len)


def _pe_add_kernel(x_ref, pe_ref, o_ref, *, xscale):
    # Tiled path : x_ref/pe_ref/o_ref are (tile_d, tile_t) tiles, identical layout.
    # Folded path: x_ref/o_ref are (B, TILE), pe_ref is (1, TILE) (sublane broadcast).
    # Fused scale+add: one vmul + one vadd per vreg; memory-bound, VPU has slack.
    o_ref[...] = (x_ref[...] * xscale + pe_ref[...]).astype(o_ref.dtype)


def _tiled_call(x, pe_dm, xscale):
    """General path (T >= 128): 3-D layout (B, D, T), full pe table, no per-call copy."""
    B, D, T = x.shape
    itemsize = jnp.dtype(x.dtype).itemsize

    # 2*x + 2*out + 2*pe bytes per output column at full-D tiles.
    bytes_per_col_full_d = 6 * D * itemsize
    if bytes_per_col_full_d * _LANE <= _TILE_VMEM_BUDGET:
        tile_d = D
        cap = (_TILE_VMEM_BUDGET // bytes_per_col_full_d // _LANE) * _LANE  # >= 128
        if T % _LANE == 0:
            tile_t = min(T, cap)
        else:
            # T >= 128 here; keep tile_t a multiple of 128 and let the last block be
            # partial (OOB output region is discarded by Pallas).
            tile_t = min((T // _LANE) * _LANE, cap)
    else:
        # Large-d_model fallback: tile D in multiples of 8 instead of raising
        # vmem_limit_bytes (v7x has no 128 MiB VMEM headroom to borrow).
        tile_t = _LANE
        max_rows = _TILE_VMEM_BUDGET // (6 * tile_t * itemsize)
        tile_d = min(D, max(_SUBLANE, (max_rows // _SUBLANE) * _SUBLANE))

    n_d = pl.cdiv(D, tile_d)
    n_t = pl.cdiv(T, tile_t)

    kernel = functools.partial(_pe_add_kernel, xscale=xscale)
    cost = pl.CostEstimate(
        flops=2 * B * D * T,
        transcendentals=0,
        bytes_accessed=(2 * B * D * T + D * T) * itemsize,
    )

    return pl.pallas_call(
        kernel,
        out_shape=jax.ShapeDtypeStruct((B, D, T), x.dtype),
        grid_spec=pltpu.PrefetchScalarGridSpec(
            num_scalar_prefetch=0,
            grid=(n_d, n_t, B),   # batch innermost: pe tile revisited, not re-fetched
            in_specs=[
                pl.BlockSpec((pl.Squeezed(), tile_d, tile_t),
                             lambda d, j, b: (b, d, j)),
                pl.BlockSpec((tile_d, tile_t), lambda d, j, b: (d, j)),
            ],
            out_specs=pl.BlockSpec((pl.Squeezed(), tile_d, tile_t),
                                   lambda d, j, b: (b, d, j)),
        ),
        compiler_params=pltpu.CompilerParams(
            dimension_semantics=("parallel", "parallel", "parallel"),
            vmem_limit_bytes=_VMEM_LIMIT_BYTES,
        ),
        cost_estimate=cost,
    )(x, pe_dm)


def _fold_pe(pe_dm, T):
    """(D, max_len) -> (1, D*T) lane-dense slab for the short-T path (cached per T)."""
    D = pe_dm.shape[0]
    return pe_dm[:, :T].reshape(1, D * T)


def _folded_call(x, pe_folded, xscale):
    """Short-T path (T < 128): fold (D, T) onto the lane axis for dense stores."""
    B, D, T = x.shape
    N = D * T
    itemsize = jnp.dtype(x.dtype).itemsize
    x2 = x.reshape(B, N)                        # contiguous reshape: free

    max_tile = _TILE_VMEM_BUDGET // ((4 * B + 2) * itemsize)
    cap = max(_LANE, (max_tile // _LANE) * _LANE)
    tile = N if N <= cap else cap
    n_t = pl.cdiv(N, tile)
    kernel = functools.partial(_pe_add_kernel, xscale=xscale)
    cost = pl.CostEstimate(
        flops=2 * B * N,
        transcendentals=0,
        bytes_accessed=(2 * B * N + N) * itemsize,
    )

    y2 = pl.pallas_call(
        kernel,
        out_shape=jax.ShapeDtypeStruct((B, N), x.dtype),
        grid_spec=pltpu.PrefetchScalarGridSpec(
            num_scalar_prefetch=0,
            grid=(n_t,),
            in_specs=[
                pl.BlockSpec((B, tile), lambda j: (0, j)),
                pl.BlockSpec((1, tile), lambda j: (0, j)),
            ],
            out_specs=pl.BlockSpec((B, tile), lambda j: (0, j)),
        ),
        compiler_params=pltpu.CompilerParams(
            dimension_semantics=("parallel",),
            vmem_limit_bytes=_VMEM_LIMIT_BYTES,
        ),
        cost_estimate=cost,
    )(x2, pe_folded)
    return y2.reshape(B, D, T)


def positional_encoding_add(x: jnp.ndarray, pe_dm: jnp.ndarray,
                            d_model: int, pe_folded=None) -> jnp.ndarray:
    """x: (B, D, T); pe_dm: (D, max_len) in the SAME dtype as x."""
    B, D, T = x.shape
    assert D == d_model
    assert T <= pe_dm.shape[1]
    assert pe_dm.dtype == x.dtype, (
        "pe table dtype must match activation dtype (kernel is HBM-bound); "
        f"got pe={pe_dm.dtype} vs x={x.dtype}")
    xscale = float(math.sqrt(d_model))
    if T < _LANE:
        if pe_folded is None:
            pe_folded = _fold_pe(pe_dm, T)
        return _folded_call(x, pe_folded, xscale)
    return _tiled_call(x, pe_dm, xscale)


class PositionalEncodingPallas:
    """JAX/Pallas equivalent of the PyTorch PositionalEncoding module (mode='add')."""

    def __init__(self, d_model, dropout=0.0, max_len=5000, reverse=False,
                 mode="add", dtype=jnp.float32):
        assert mode == "add", "only mode='add' implemented"
        self.d_model = d_model
        self.dropout = dropout
        self.reverse = reverse
        self.max_len = max_len
        self.xscale = math.sqrt(d_model)
        # Parameter-free buffer, stored pre-transposed as (d_model, max_len).
        self.pe_dm = _make_pe_dm(max_len, d_model, reverse, dtype)
        # Cache of lane-dense folded pe slabs for the short-T path, keyed by T.
        self._folded_cache = {}

    def _extend_pe(self, T, dtype):
        """Mirror PyTorch extend_pe: grow the table and/or recast to the activation dtype."""
        if T > self.pe_dm.shape[1]:
            self.max_len = T
            self.pe_dm = _make_pe_dm(T, self.d_model, self.reverse, dtype)
            self._folded_cache.clear()
        elif self.pe_dm.dtype != dtype:
            self.pe_dm = self.pe_dm.astype(dtype)
            self._folded_cache.clear()

    def __call__(self, x: jnp.ndarray) -> jnp.ndarray:
        # x: (B, d_model, T) -- same layout the PyTorch caller uses.
        B, D, T = x.shape
        assert D == self.d_model
        self._extend_pe(T, x.dtype)
        pe_folded = None
        if T < _LANE:
            pe_folded = self._folded_cache.get(T)
            if pe_folded is None:
                pe_folded = _fold_pe(self.pe_dm, T)
                self._folded_cache[T] = pe_folded
        # TODO(synk): training-time dropout not implemented (eval-mode identity);
        # would be fused in-kernel via pltpu.prng_seed + pltpu.stateful_bernoulli.
        return positional_encoding_add(x, self.pe_dm, self.d_model, pe_folded)


def _reference(x, pe_dm, d_model):
    # Pure-JAX reference mirroring the PyTorch forward (eval mode) in NCL layout.
    xscale = math.sqrt(d_model)
    T = x.shape[2]
    return x * xscale + pe_dm[None, :, :T]


if __name__ == "__main__":
    key = jax.random.PRNGKey(0)

    def _check(B, d_model, T, max_len, dtype=jnp.float32, tol=1e-5):
        k = jax.random.fold_in(key, T + d_model)
        x = jax.random.normal(k, (B, d_model, T), dtype=dtype)
        mod = PositionalEncodingPallas(d_model=d_model, dropout=0.0,
                                       max_len=max_len, dtype=dtype)
        y = jax.block_until_ready(mod(x))
        y_ref = _reference(x, mod.pe_dm, d_model)
        assert y.shape == (B, d_model, T)
        assert y.dtype == x.dtype
        assert jnp.allclose(y.astype(jnp.float32), y_ref.astype(jnp.float32),
                            atol=tol, rtol=tol), (B, d_model, T, dtype)

    # Primary demo shape (short T -> folded lane-dense path, cached pe slab).
    _check(2, 32, 16, 64)
    # Lane-aligned T -> tiled path reading straight out of the persistent table.
    _check(2, 64, 256, 512)
    # Unaligned T >= 128 -> tiled path, partial last block, full pe table (no slice copy).
    _check(2, 32, 200, 512)
    # bf16 end-to-end: pe kept in activation dtype -> half the HBM traffic of f32.
    _check(2, 64, 256, 512, dtype=jnp.bfloat16, tol=2e-2)

    print("KERNEL_OK")
</pallas_src>

<mosaic_0001>
module attributes {stable_mosaic.version = 11 : i64} {
  func.func @_pe_add_kernel(%arg0: i32, %arg1: memref<2x512xf32, #tpu.memory_space<vmem>>, %arg2: memref<1x512xf32, #tpu.memory_space<vmem>>, %arg3: memref<2x512xf32, #tpu.memory_space<vmem>>) attributes {dimension_semantics = [#tpu.dimension_semantics<parallel>], iteration_bounds = array<i64: 1>, scalar_prefetch = 0 : i64, scratch_operands = 0 : i64, tpu.core_type = #tpu.core_type<tc>, window_params = [{transform_indices = @transform_0, window_bounds = array<i64: 2, 512>}, {transform_indices = @transform_1, window_bounds = array<i64: 1, 512>}, {transform_indices = @transform_2, window_bounds = array<i64: 2, 512>}]} {
    %c0 = arith.constant 0 : index
    %c0_0 = arith.constant 0 : index
    %0 = vector.load %arg1[%c0, %c0_0] : memref<2x512xf32, #tpu.memory_space<vmem>>, vector<2x512xf32>
    %cst = arith.constant 5.65685415 : f32
    %1 = vector.broadcast %cst : f32 to vector<2x512xf32>
    %2 = arith.mulf %0, %1 : vector<2x512xf32>
    %c0_1 = arith.constant 0 : index
    %c0_2 = arith.constant 0 : index
    %3 = vector.load %arg2[%c0_1, %c0_2] : memref<1x512xf32, #tpu.memory_space<vmem>>, vector<1x512xf32>
    %4 = vector.broadcast %3 : vector<1x512xf32> to vector<2x512xf32>
    %5 = arith.addf %2, %4 : vector<2x512xf32>
    %c0_3 = arith.constant 0 : index
    %c0_4 = arith.constant 0 : index
    %6 = vector.load %arg3[%c0_3, %c0_4] : memref<2x512xf32, #tpu.memory_space<vmem>>, vector<2x512xf32>
    tpu.vector_store %arg3[%c0_3, %c0_4], %5 {strides = array<i32>} : memref<2x512xf32, #tpu.memory_space<vmem>>, vector<2x512xf32>,
    return
  }
  func.func @transform_0(%arg0: i32) -> (i32, i32) {
    %c0_i32 = arith.constant 0 : i32
    %c0_i32_0 = arith.constant 0 : i32
    return %c0_i32, %arg0 : i32, i32
  }
  func.func @transform_1(%arg0: i32) -> (i32, i32) {
    %c0_i32 = arith.constant 0 : i32
    %c0_i32_0 = arith.constant 0 : i32
    return %c0_i32, %arg0 : i32, i32
  }
  func.func @transform_2(%arg0: i32) -> (i32, i32) {
    %c0_i32 = arith.constant 0 : i32
    %c0_i32_0 = arith.constant 0 : i32
    return %c0_i32, %arg0 : i32, i32
  }
}

</mosaic_0001>

<llo_original>
// kernel: tpu_custom_call.1
$region0: #{tpu_custom_call.1}
  #allocation0 [shape = 'u32[]', space=smem, size = 0x4, offset = 0x4, fixed_abs, tag = 'smem constant byte address 0x4 - core index']
  #allocation1 [shape = 'u32[144,128]{1,0:T(1,128)}', space=vmem, size = 0x12000, scoped, tag = 'internal scratch']
  %s0 = inlined_call_operand.hbm [shape: f32[2,512], index: 0, kind: input, shape index: {}]
  %s1 = inlined_call_operand.hbm [shape: f32[1,512], index: 1, kind: input, shape index: {}]
  %s2 = inlined_call_operand.hbm [shape: f32[2,512], index: 2, kind: output, shape index: {}]
  %s3 = sld [smem:[#allocation0]]
  $region26: #{tpu_custom_call.1} parent=0
    _
  %s5 = ssub.s32 1, %s3
  %s6 = scalar_select 0, %s5, %s3
  $region1: #{tpu_custom_call.1} parent=0
    #allocation2 [shape = 'u8[4096]{0}', space=vmem, size = 0x1000, scoped, tag = 'input window, operand 0, single buffered']
    #allocation3 [shape = 's32[1]{0}', space=sflag, size = 0x4, scoped, tag = 'scoped memory for tpu_custom_call.1']
    #allocation4 [shape = 's32[1]{0}', space=sflag, size = 0x4, scoped, tag = 'scoped memory for tpu_custom_call.1']
    #allocation5 [shape = 'u8[2048]{0}', space=vmem, size = 0x800, scoped, tag = 'input window, operand 1, single buffered']
    #allocation6 [shape = 's32[1]{0}', space=sflag, size = 0x4, scoped, tag = 'scoped memory for tpu_custom_call.1']
    #allocation7 [shape = 'u8[4096]{0}', space=vmem, size = 0x1000, scoped, tag = 'output window, operand 0, single buffered']
    %7 = vsyncpa [#allocation3], 0
    %8 = vsyncpa [#allocation6], 0
    %9 = vsyncpa [#allocation4], 0
    // Predicated region
    $region2: #{tpu_custom_call.1} parent=1 // pred_check
      _
    $region3: #{tpu_custom_call.1} parent=1 // pred_check_branch
      %11 = sbr.rel (0) target = $region5
    $region4: #{tpu_custom_call.1} parent=1 // pred_region
      %s13 = ssub.s32 128, 128
      %14 = vsyncadd [#allocation3], %s13
      %s16 = sshll.u32 [#allocation2], 4
      %s17 = int_to_ptr.vmem [resolvable:$true] %s16
      %19 = dma.hbm_to_vmem [thread:$0]  %s0, 128, %s17, [#allocation3]
    $region5: #{tpu_custom_call.1} parent=1 // pred_fallthru
      _
    // Predicated region
    $region6: #{tpu_custom_call.1} parent=1 // pred_check
      _
    $region7: #{tpu_custom_call.1} parent=1 // pred_check_branch
      %21 = sbr.rel (0) target = $region9
    $region8: #{tpu_custom_call.1} parent=1 // pred_region
      %s23 = ssub.s32 64, 64
      %24 = vsyncadd [#allocation6], %s23
      %s26 = sshll.u32 [#allocation5], 4
      %s27 = int_to_ptr.vmem [resolvable:$true] %s26
      %29 = dma.hbm_to_vmem [thread:$0]  %s1, 64, %s27, [#allocation6]
    $region9: #{tpu_custom_call.1} parent=1 // pred_fallthru
      _
    // Predicated region
    $region10: #{tpu_custom_call.1} parent=1 // pred_check
      _
    $region11: #{tpu_custom_call.1} parent=1 // pred_check_branch
      %31 = sbr.rel (0) target = $region13
    $region12: #{tpu_custom_call.1} parent=1 // pred_region
      %32 = dma.done [#allocation3], 128
    $region13: #{tpu_custom_call.1} parent=1 // pred_fallthru
      _
    // Predicated region
    $region14: #{tpu_custom_call.1} parent=1 // pred_check
      _
    $region15: #{tpu_custom_call.1} parent=1 // pred_check_branch
      %34 = sbr.rel (0) target = $region17
    $region16: #{tpu_custom_call.1} parent=1 // pred_region
      %35 = dma.done [#allocation6], 64
    $region17: #{tpu_custom_call.1} parent=1 // pred_fallthru
      _
    %v36 = vld [vmem:[#allocation2] sm:$0xff]
    %v37 = vmul.f32 %v36, 5.656854
    %v38 = vld [vmem:[#allocation5] sm:$0xf]
    %v40 = vlaneseq
    %v41 = vshrl.u32 %v40, 7
    %v42 = vsub.s32 0, %v41
    %v43 = vrot.slane %v38, %v42
    %v44 = vlaneseq
    %v45 = vshrl.u32 %v44, 7
    %v46 = vsub.s32 1, %v45
    %v47 = vrot.slane %v38, %v46
    %v48 = vlaneseq
    %v49 = vshrl.u32 %v48, 7
    %v50 = vsub.s32 2, %v49
    %v51 = vrot.slane %v38, %v50
    %v52 = vlaneseq
    %v53 = vshrl.u32 %v52, 7
    %v54 = vsub.s32 3, %v53
    %v55 = vrot.slane %v38, %v54
    %v56 = vcombine.low %v43, %v47
    %v57 = vcombine.low %v51, %v55
    %v59 = vunpack.c.l.s4 1983009808
    %v60 = vunpack.c.0.s8 %v59
    %v61 = vlaneseq
    %v62 = vshrl.u32 %v61, 7
    %v63 = vsub.s32 %v60, %v62
    %v64 = vrot.slane %v56, %v63
    %v66 = vunpack.c.l.s4 1983009808
    %v67 = vunpack.c.0.s8 %v66
    %v68 = vlaneseq
    %v69 = vshrl.u32 %v68, 7
    %v70 = vsub.s32 %v67, %v69
    %v71 = vrot.slane %v57, %v70
    %v72 = vcombine.low %v64, %v71
    %v74 = vadd.f32 %v37, %v72
    %75 = vst [vmem:[#allocation7] sm:$0xff] %v74
    // Predicated region
    $region18: #{tpu_custom_call.1} parent=1 // pred_check
      _
    $region19: #{tpu_custom_call.1} parent=1 // pred_check_branch
      %77 = sbr.rel (0) target = $region21
    $region20: #{tpu_custom_call.1} parent=1 // pred_region
      %s79 = ssub.s32 128, 128
      %80 = vsyncadd [#allocation4], %s79
      %s82 = sshll.u32 [#allocation7], 4
      %s83 = int_to_ptr.vmem [resolvable:$true] %s82
      %85 = dma.vmem_to_hbm [thread:$0]  %s83, 128, %s2, [#allocation4]
    $region21: #{tpu_custom_call.1} parent=1 // pred_fallthru
      _
    // Predicated region
    $region22: #{tpu_custom_call.1} parent=1 // pred_check
      _
    $region23: #{tpu_custom_call.1} parent=1 // pred_check_branch
      %87 = sbr.rel (0) target = $region25
    $region24: #{tpu_custom_call.1} parent=1 // pred_region
      %88 = dma.done [#allocation4], 128
    $region25: #{tpu_custom_call.1} parent=1 // pred_fallthru
      _
    %89 = vsyncpa [#allocation3], 1
    %90 = vsyncpa [#allocation6], 1
    %91 = vsyncpa [#allocation4], 1

</llo_original>
